<compile_context>
chip_gen: v7x
topology: tpu7x:2x2x1
jax: 0.10.0
libtpu: 0.0.40
codegen_flags: <defaults>
</compile_context>

<pallas_src>
import functools

import jax
import jax.numpy as jnp
from jax.experimental import pallas as pl
from jax.experimental.pallas import tpu as pltpu

# ~1M elements per input block: ~4 MiB f32 / ~2 MiB bf16 of HBM traffic per
# stream per step.  Capped in ELEMENTS (not bytes) so the f32 temporaries the
# kernel body materializes in VMEM stay bounded on v7x's 64 MiB VMEM.
_DEFAULT_BLOCK_ELEMS = 1024 * 1024
_LANE_CANDIDATES = (2048, 1024, 512, 256, 128)
_SMALL_INPUT_BYTES = 1 << 20  # below this, fused XLA beats any kernel launch


def _weighted_huber_partial_kernel(est_ref, tgt_ref, out_ref, *, delta,
                                   last_block_rows, needs_mask):
    # Cast to f32 on the VPU (inputs may be bf16/fp16; DMA moved native bytes).
    e = est_ref[...].astype(jnp.float32)
    t = tgt_ref[...].astype(jnp.float32)

    residual = jnp.abs(e - t)
    # Fused Huber via the clamp identity (no compare/select):
    #   r_c = min(residual, delta)
    #   residual <= delta: r_c*(residual - 0.5*r_c) = 0.5*residual^2
    #   residual >  delta: delta*(residual - 0.5*delta)
    r_c = jnp.minimum(residual, delta)
    huber = r_c * (residual - 0.5 * r_c)

    # sqrt rides the otherwise-idle EUP slot; evaluated on all lanes, the select
    # discards NaNs from target <= 0 (and from garbage rows of a partial block).
    weight = jnp.where(t <= 20.0, 1.0, jnp.sqrt(t))
    wl = huber * weight

    if needs_mask:
        is_last = pl.program_id(0) == pl.num_programs(0) - 1

        @pl.when(is_last)
        def _():
            # Only the last block is partial: rows past `last_block_rows` hold
            # garbage in the VMEM buffer -> zero them before the reduction.
            row_ids = jax.lax.broadcasted_iota(jnp.int32, wl.shape, 0)
            wl_masked = jnp.where(row_ids < last_block_rows, wl, 0.0)
            out_ref[0] = jnp.sum(wl_masked, axis=0, keepdims=True)

        @pl.when(jnp.logical_not(is_last))
        def _():
            out_ref[0] = jnp.sum(wl, axis=0, keepdims=True)
    else:
        # Lane-wide partial sum (sublane reduction only); cross-lane/cross-block
        # reduction happens once outside the kernel.
        out_ref[0] = jnp.sum(wl, axis=0, keepdims=True)


def _fused_xla_loss(estimation, target, delta):
    e = estimation.astype(jnp.float32)
    t = target.astype(jnp.float32)
    residual = jnp.abs(e - t)
    r_c = jnp.minimum(residual, delta)
    huber = r_c * (residual - 0.5 * r_c)
    weight = jnp.where(t <= 20.0, 1.0, jnp.sqrt(t))
    return jnp.mean(huber * weight)


def huber_loss_pallas(estimation: jax.Array, target: jax.Array, delta: float = 1.0,
                      *, target_block_elems: int = _DEFAULT_BLOCK_ELEMS,
                      force_pallas: bool = False) -> jax.Array:
    assert estimation.shape == target.shape
    n = int(estimation.size)
    itemsize = jnp.dtype(estimation.dtype).itemsize
    total_bytes = n * (itemsize + jnp.dtype(target.dtype).itemsize)

    # Small-input fallback: launch/grid overhead dominates; fused XLA is faster.
    if not force_pallas and total_bytes < _SMALL_INPUT_BYTES:
        return _fused_xla_loss(estimation, target, float(delta))

    # Flatten (free) — keep native dtype, do NOT upcast in the wrapper.
    e = estimation.reshape(-1)
    t = target.reshape(-1)

    # Widest lane dimension dividing N -> zero-copy lane-dense reshape.
    lane_w = None
    for cand in _LANE_CANDIDATES:
        if n % cand == 0:
            lane_w = cand
            break
    if lane_w is None:
        # Rare path: N not a multiple of 128.  Pad to 128; padded zeros give
        # residual=0 -> huber=0 -> contribution 0, so the sum is unchanged.
        lane_w = 128
        pad = (-n) % lane_w
        e = jnp.pad(e, (0, pad))
        t = jnp.pad(t, (0, pad))

    rows = e.size // lane_w
    e2 = e.reshape(rows, lane_w)
    t2 = t.reshape(rows, lane_w)

    # Sublane packing for the native dtype: 8 (32-bit), 16 (16-bit), 32 (8-bit).
    packing = 8 if itemsize >= 4 else (16 if itemsize == 2 else 32)

    # Block rows: ~target_block_elems elements per block, rounded to the packing
    # multiple (or the full row count if everything fits in one block).
    budget_rows = max(packing, ((target_block_elems // lane_w) // packing) * packing)
    block_rows = rows if rows <= budget_rows else budget_rows
    num_blocks = -(-rows // block_rows)
    needs_mask = (rows % block_rows) != 0
    last_block_rows = rows - (num_blocks - 1) * block_rows

    kernel = functools.partial(
        _weighted_huber_partial_kernel,
        delta=float(delta),
        last_block_rows=last_block_rows,
        needs_mask=needs_mask,
    )

    partials = pl.pallas_call(
        kernel,
        out_shape=jax.ShapeDtypeStruct((num_blocks, 1, lane_w), jnp.float32),
        grid=(num_blocks,),
        in_specs=[
            # If profiling shows exposed DMA at phase boundaries, add
            # pipeline_mode=pl.Buffered(3) here (extra block/input is cheap).
            pl.BlockSpec((block_rows, lane_w), lambda i: (i, 0)),
            pl.BlockSpec((block_rows, lane_w), lambda i: (i, 0)),
        ],
        out_specs=pl.BlockSpec((1, 1, lane_w), lambda i: (i, 0, 0)),
        compiler_params=pltpu.CompilerParams(
            # Blocks are independent; see TODO(synk) above re: CORE_PARALLEL on v7x.
            dimension_semantics=("parallel",),
            vmem_limit_bytes=48 * 1024 * 1024,
        ),
    )(e2, t2)

    # Final cross-lane / cross-block reduction + mean over ORIGINAL element count.
    return jnp.sum(partials) / jnp.float32(n)


def _reference(estimation, target, delta=1.0):
    e = estimation.astype(jnp.float32)
    t = target.astype(jnp.float32)
    residual = jnp.abs(e - t)
    quad = 0.5 * jnp.square(residual)
    lin = delta * residual - 0.5 * delta ** 2
    huber = jnp.where(residual <= delta, quad, lin)
    weight = jnp.where(t <= 20.0, jnp.ones_like(t), jnp.sqrt(t))
    return jnp.mean(huber * weight)


if __name__ == "__main__":
    key = jax.random.PRNGKey(0)
    k1, k2, k3, k4, k5, k6 = jax.random.split(key, 6)

    # 1) Primary check: NCHW-style input implied by the module usage.
    #    force_pallas so the small-input XLA fallback does not bypass the kernel.
    shape = (2, 4, 16, 16)
    est = jax.random.uniform(k1, shape, jnp.float32, minval=0.0, maxval=40.0)
    tgt = jax.random.uniform(k2, shape, jnp.float32, minval=0.0, maxval=40.0)
    loss = jax.block_until_ready(huber_loss_pallas(est, tgt, delta=1.0, force_pallas=True))
    ref = _reference(est, tgt, delta=1.0)
    assert jnp.allclose(loss, ref, rtol=1e-5, atol=1e-5), (loss, ref)

    # 2) Multi-block parallel grid + last-block row masking
    #    (12800 elems -> lane_w=512, rows=25, block_rows=8, 4 blocks, last=1 row).
    shape2 = (2, 50, 128)
    est2 = jax.random.uniform(k3, shape2, jnp.float32, minval=0.0, maxval=40.0)
    tgt2 = jax.random.uniform(k4, shape2, jnp.float32, minval=0.0, maxval=40.0)
    loss2 = jax.block_until_ready(
        huber_loss_pallas(est2, tgt2, delta=1.0, target_block_elems=4096, force_pallas=True))
    ref2 = _reference(est2, tgt2, delta=1.0)
    assert jnp.allclose(loss2, ref2, rtol=1e-5, atol=1e-5), (loss2, ref2)

    # 3) Native bf16 path: 16-row sublane packing, 3 blocks, masked last block
    #    (81920 elems -> lane_w=2048, rows=40, block_rows=16, last=8 rows).
    shape3 = (4, 160, 128)
    est3 = jax.random.uniform(k5, shape3, jnp.float32, 0.0, 40.0).astype(jnp.bfloat16)
    tgt3 = jax.random.uniform(k6, shape3, jnp.float32, 0.0, 40.0).astype(jnp.bfloat16)
    loss3 = jax.block_until_ready(
        huber_loss_pallas(est3, tgt3, delta=1.0, target_block_elems=32768, force_pallas=True))
    ref3 = _reference(est3, tgt3, delta=1.0)
    assert jnp.allclose(loss3, ref3, rtol=1e-4, atol=1e-4), (loss3, ref3)

    # 4) Small-input XLA fallback path (no pallas_call) matches as well.
    loss4 = jax.block_until_ready(huber_loss_pallas(est, tgt, delta=1.0))
    assert jnp.allclose(loss4, ref, rtol=1e-5, atol=1e-5), (loss4, ref)

    print("KERNEL_OK")
</pallas_src>

<mosaic_0001>
module attributes {stable_mosaic.version = 11 : i64} {
  func.func @_weighted_huber_partial_kernel(%arg0: i32, %arg1: memref<1x2048xf32, #tpu.memory_space<vmem>>, %arg2: memref<1x2048xf32, #tpu.memory_space<vmem>>, %arg3: memref<1x1x2048xf32, #tpu.memory_space<vmem>>) attributes {dimension_semantics = [#tpu.dimension_semantics<parallel>], iteration_bounds = array<i64: 1>, scalar_prefetch = 0 : i64, scratch_operands = 0 : i64, tpu.core_type = #tpu.core_type<tc>, window_params = [{transform_indices = @transform_0, window_bounds = array<i64: 1, 2048>}, {transform_indices = @transform_1, window_bounds = array<i64: 1, 2048>}, {transform_indices = @transform_2, window_bounds = array<i64: 1, 1, 2048>}]} {
    %c0 = arith.constant 0 : index
    %c0_0 = arith.constant 0 : index
    %0 = vector.load %arg1[%c0, %c0_0] : memref<1x2048xf32, #tpu.memory_space<vmem>>, vector<1x2048xf32>
    %c0_1 = arith.constant 0 : index
    %c0_2 = arith.constant 0 : index
    %1 = vector.load %arg2[%c0_1, %c0_2] : memref<1x2048xf32, #tpu.memory_space<vmem>>, vector<1x2048xf32>
    %2 = arith.subf %0, %1 : vector<1x2048xf32>
    %3 = math.absf %2 : vector<1x2048xf32>
    %cst = arith.constant 1.000000e+00 : f32
    %4 = vector.broadcast %cst : f32 to vector<1x2048xf32>
    %5 = arith.minimumf %3, %4 : vector<1x2048xf32>
    %cst_3 = arith.constant 5.000000e-01 : f32
    %6 = vector.broadcast %cst_3 : f32 to vector<1x2048xf32>
    %7 = arith.mulf %6, %5 : vector<1x2048xf32>
    %8 = arith.subf %3, %7 : vector<1x2048xf32>
    %9 = arith.mulf %5, %8 : vector<1x2048xf32>
    %cst_4 = arith.constant 2.000000e+01 : f32
    %10 = vector.broadcast %cst_4 : f32 to vector<1x2048xf32>
    %11 = arith.cmpf ole, %1, %10 : vector<1x2048xf32>
    %12 = math.sqrt %1 : vector<1x2048xf32>
    %cst_5 = arith.constant 1.000000e+00 : f32
    %13 = vector.broadcast %cst_5 : f32 to vector<1x2048xf32>
    %14 = arith.select %11, %13, %12 : vector<1x2048xi1>, vector<1x2048xf32>
    %15 = arith.mulf %9, %14 : vector<1x2048xf32>
    %cst_6 = arith.constant dense<0.000000e+00> : vector<2048xf32>
    %16 = vector.multi_reduction <add>, %15, %cst_6 [0] : vector<1x2048xf32> to vector<2048xf32>
    %17 = vector.shape_cast %16 : vector<2048xf32> to vector<1x2048xf32>
    %c0_7 = arith.constant 0 : index
    %c0_8 = arith.constant 0 : index
    %c0_9 = arith.constant 0 : index
    %18 = vector.load %arg3[%c0_7, %c0_8, %c0_9] : memref<1x1x2048xf32, #tpu.memory_space<vmem>>, vector<1x1x2048xf32>
    %19 = vector.shape_cast %18 : vector<1x1x2048xf32> to vector<1x2048xf32>
    %20 = vector.shape_cast %17 : vector<1x2048xf32> to vector<1x1x2048xf32>
    tpu.vector_store %arg3[%c0_7, %c0_8, %c0_9], %20 {strides = array<i32>} : memref<1x1x2048xf32, #tpu.memory_space<vmem>>, vector<1x1x2048xf32>,
    return
  }
  func.func @transform_0(%arg0: i32) -> (i32, i32) {
    %c0_i32 = arith.constant 0 : i32
    %c0_i32_0 = arith.constant 0 : i32
    return %arg0, %c0_i32 : i32, i32
  }
  func.func @transform_1(%arg0: i32) -> (i32, i32) {
    %c0_i32 = arith.constant 0 : i32
    %c0_i32_0 = arith.constant 0 : i32
    return %arg0, %c0_i32 : i32, i32
  }
  func.func @transform_2(%arg0: i32) -> (i32, i32, i32) {
    %c0_i32 = arith.constant 0 : i32
    %c0_i32_0 = arith.constant 0 : i32
    %c0_i32_1 = arith.constant 0 : i32
    return %arg0, %c0_i32, %c0_i32_0 : i32, i32, i32
  }
}

</mosaic_0001>

<llo_original>
// kernel: tpu_custom_call.1
$region0: #{tpu_custom_call.1}
  #allocation0 [shape = 'u32[]', space=smem, size = 0x4, offset = 0x4, fixed_abs, tag = 'smem constant byte address 0x4 - core index']
  #allocation1 [shape = 'u32[144,128]{1,0:T(1,128)}', space=vmem, size = 0x12000, scoped, tag = 'internal scratch']
  %s0 = inlined_call_operand.hbm [shape: f32[1,2048], index: 0, kind: input, shape index: {}]
  %s1 = inlined_call_operand.hbm [shape: f32[1,2048], index: 1, kind: input, shape index: {}]
  %s2 = inlined_call_operand.hbm [shape: f32[1,1,2048], index: 2, kind: output, shape index: {}]
  %s3 = sld [smem:[#allocation0]]
  $region26: #{tpu_custom_call.1} parent=0
    _
  %s5 = ssub.s32 1, %s3
  %s6 = scalar_select 0, %s5, %s3
  $region1: #{tpu_custom_call.1} parent=0
    #allocation2 [shape = 'u8[8192]{0}', space=vmem, size = 0x2000, scoped, tag = 'input window, operand 0, single buffered']
    #allocation3 [shape = 's32[1]{0}', space=sflag, size = 0x4, scoped, tag = 'scoped memory for tpu_custom_call.1']
    #allocation4 [shape = 's32[1]{0}', space=sflag, size = 0x4, scoped, tag = 'scoped memory for tpu_custom_call.1']
    #allocation5 [shape = 'u8[8192]{0}', space=vmem, size = 0x2000, scoped, tag = 'input window, operand 1, single buffered']
    #allocation6 [shape = 's32[1]{0}', space=sflag, size = 0x4, scoped, tag = 'scoped memory for tpu_custom_call.1']
    #allocation7 [shape = 'u8[8192]{0}', space=vmem, size = 0x2000, scoped, tag = 'output window, operand 0, single buffered']
    %7 = vsyncpa [#allocation3], 0
    %8 = vsyncpa [#allocation6], 0
    %9 = vsyncpa [#allocation4], 0
    // Predicated region
    $region2: #{tpu_custom_call.1} parent=1 // pred_check
      _
    $region3: #{tpu_custom_call.1} parent=1 // pred_check_branch
      %11 = sbr.rel (0) target = $region5
    $region4: #{tpu_custom_call.1} parent=1 // pred_region
      %s13 = ssub.s32 256, 256
      %14 = vsyncadd [#allocation3], %s13
      %s16 = sshll.u32 [#allocation2], 4
      %s17 = int_to_ptr.vmem [resolvable:$true] %s16
      %19 = dma.hbm_to_vmem [thread:$0]  %s0, 256, %s17, [#allocation3]
    $region5: #{tpu_custom_call.1} parent=1 // pred_fallthru
      _
    // Predicated region
    $region6: #{tpu_custom_call.1} parent=1 // pred_check
      _
    $region7: #{tpu_custom_call.1} parent=1 // pred_check_branch
      %21 = sbr.rel (0) target = $region9
    $region8: #{tpu_custom_call.1} parent=1 // pred_region
      %s23 = ssub.s32 256, 256
      %24 = vsyncadd [#allocation6], %s23
      %s26 = sshll.u32 [#allocation5], 4
      %s27 = int_to_ptr.vmem [resolvable:$true] %s26
      %29 = dma.hbm_to_vmem [thread:$0]  %s1, 256, %s27, [#allocation6]
    $region9: #{tpu_custom_call.1} parent=1 // pred_fallthru
      _
    // Predicated region
    $region10: #{tpu_custom_call.1} parent=1 // pred_check
      _
    $region11: #{tpu_custom_call.1} parent=1 // pred_check_branch
      %31 = sbr.rel (0) target = $region13
    $region12: #{tpu_custom_call.1} parent=1 // pred_region
      %32 = dma.done [#allocation3], 256
    $region13: #{tpu_custom_call.1} parent=1 // pred_fallthru
      _
    // Predicated region
    $region14: #{tpu_custom_call.1} parent=1 // pred_check
      _
    $region15: #{tpu_custom_call.1} parent=1 // pred_check_branch
      %34 = sbr.rel (0) target = $region17
    $region16: #{tpu_custom_call.1} parent=1 // pred_region
      %35 = dma.done [#allocation6], 256
    $region17: #{tpu_custom_call.1} parent=1 // pred_fallthru
      _
    %v36 = vld [vmem:[#allocation2] sm:$0xff]
    %v37 = vld [vmem:[#allocation2 + $0x8] sm:$0xff]
    %v38 = vld [vmem:[#allocation5] sm:$0xff]
    %v39 = vld [vmem:[#allocation5 + $0x8] sm:$0xff]
    %v40 = vsub.f32 %v36, %v38
    %v41 = vsub.f32 %v37, %v39
    %v42 = vand.u32 2147483647, %v40
    %v43 = vand.u32 2147483647, %v41
    %v44 = vmin.f32 %v42, 1.0
    %v45 = vmin.f32 %v43, 1.0
    %v46 = vmul.f32 %v44, 0.5
    %v47 = vmul.f32 %v45, 0.5
    %v48 = vsub.f32 %v42, %v46
    %v49 = vsub.f32 %v43, %v47
    %v50 = vmul.f32 %v44, %v48
    %v51 = vmul.f32 %v45, %v49
    %vm52 = vcmp.le.f32.partialorder %v38, 20.0
    %vm53 = vcmp.le.f32.partialorder %v39, 20.0
    %v54 = vrsqrt.pop %v38
    %v55 = vmul.f32 %v38, %v54
    %vm56 = vcmp.eq.f32.partialorder %v38, inf
    %v57 = vsel %vm56, %v38, %v55
    %vm58 = vcmp.eq.f32.partialorder %v38, 0.0
    %v59 = vand.u32 %v38, 2147483648
    %v60 = vsel %vm58, %v59, %v57
    %v61 = vrsqrt.pop %v39
    %v62 = vmul.f32 %v39, %v61
    %vm63 = vcmp.eq.f32.partialorder %v39, inf
    %v64 = vsel %vm63, %v39, %v62
    %vm65 = vcmp.eq.f32.partialorder %v39, 0.0
    %v66 = vand.u32 %v39, 2147483648
    %v67 = vsel %vm65, %v66, %v64
    %v68 = vsel %vm52, 1.0, %v60
    %v69 = vsel %vm53, 1.0, %v67
    %v70 = vmul.f32 %v50, %v68
    %v71 = vmul.f32 %v51, %v69
    %v72 = vadd.f32 %v70, 0.0
    %v73 = vadd.f32 %v71, 0.0
    %74 = vst [vmem:[#allocation7] sm:$0xff] %v72
    %75 = vst [vmem:[#allocation7 + $0x8] sm:$0xff] %v73
    // Predicated region
    $region18: #{tpu_custom_call.1} parent=1 // pred_check
      _
    $region19: #{tpu_custom_call.1} parent=1 // pred_check_branch
      %77 = sbr.rel (0) target = $region21
    $region20: #{tpu_custom_call.1} parent=1 // pred_region
      %s79 = ssub.s32 256, 256
      %80 = vsyncadd [#allocation4], %s79
      %s82 = sshll.u32 [#allocation7], 4
      %s83 = int_to_ptr.vmem [resolvable:$true] %s82
      %85 = dma.vmem_to_hbm [thread:$0]  %s83, 256, %s2, [#allocation4]
    $region21: #{tpu_custom_call.1} parent=1 // pred_fallthru
      _
    // Predicated region
    $region22: #{tpu_custom_call.1} parent=1 // pred_check
      _
    $region23: #{tpu_custom_call.1} parent=1 // pred_check_branch
      %87 = sbr.rel (0) target = $region25
    $region24: #{tpu_custom_call.1} parent=1 // pred_region
      %88 = dma.done [#allocation4], 256
    $region25: #{tpu_custom_call.1} parent=1 // pred_fallthru
      _
    %89 = vsyncpa [#allocation3], 1
    %90 = vsyncpa [#allocation6], 1
    %91 = vsyncpa [#allocation4], 1

</llo_original>
